<compile_context>
chip_gen: v7x
topology: tpu7x:2x2x1
jax: 0.10.0
libtpu: 0.0.40
codegen_flags: <defaults>
</compile_context>

<pallas_src>
import jax
import jax.numpy as jnp
from jax.experimental import pallas as pl
from jax.experimental.pallas import tpu as pltpu

LANE = 128      # lane (last-dim) granularity
SUBLANE = 16    # batch-tile granularity (16 covers bf16 sublane packing too)


def _round_up(n, m):
    return ((n + m - 1) // m) * m


# --------------------------------------------------------------------------
# Kernel: grid = (batch_tiles, k_tiles).  Layer-1 matmul is accumulated over
# the K (input-feature) axis into a f32 VMEM scratch; layers 2/3 + store run
# on the final K step.  w2/b2/w3/b3/b1 are VMEM-resident across all steps.
# --------------------------------------------------------------------------
def mlp_kernel(x_ref, w1_ref, b1_ref, w2_ref, b2_ref, w3_ref, b3_ref,
               o_ref, acc_ref):
    k = pl.program_id(1)

    @pl.when(k == 0)
    def _():
        acc_ref[...] = jnp.zeros_like(acc_ref)

    # Layer 1 partial product on the MXU, accumulated in f32.
    acc_ref[...] += jnp.dot(x_ref[...], w1_ref[...],
                            preferred_element_type=jnp.float32)

    @pl.when(k == pl.num_programs(1) - 1)
    def _():
        # bias + ReLU on the f32 accumulator, then cast back for the MXU.
        h1 = jnp.maximum(acc_ref[...] + b1_ref[...], 0.0).astype(w2_ref.dtype)

        h2 = jnp.dot(h1, w2_ref[...],
                     preferred_element_type=jnp.float32) + b2_ref[...]
        h2 = jnp.maximum(h2, 0.0).astype(w3_ref.dtype)

        logits = jnp.dot(h2, w3_ref[...],
                         preferred_element_type=jnp.float32) + b3_ref[...]
        o_ref[...] = logits.astype(o_ref.dtype)   # lane-dense full store


# --------------------------------------------------------------------------
# One-time parameter preparation (padding + dtype cast) — off the hot path.
# --------------------------------------------------------------------------
def prepare_params(w1, b1, w2, b2, w3, b3, *, k_tile=512,
                   weight_dtype=jnp.bfloat16):
    """Pad weights/biases to lane-dense (multiple-of-128) shapes ONCE and cast
    weights to `weight_dtype`.  Biases stay f32 (added on the f32 accumulator).

    Zero padding is mathematically inert: padded input columns hit zero weight
    rows, padded hidden units get zero bias -> ReLU(0)=0 -> contribute nothing
    downstream, padded class columns are sliced off in the wrapper.
    """
    in_features, hidden = w1.shape
    num_classes = w3.shape[1]

    in_p = _round_up(in_features, LANE)
    tk = min(_round_up(k_tile, LANE), in_p)   # K tile for layer-1 reduction
    in_p = _round_up(in_p, tk)                # make in_p divisible by tk
    hid_p = _round_up(hidden, LANE)
    cls_p = _round_up(num_classes, LANE)

    w1p = jnp.zeros((in_p, hid_p), weight_dtype
                    ).at[:in_features, :hidden].set(w1.astype(weight_dtype))
    b1p = jnp.zeros((1, hid_p), jnp.float32
                    ).at[:, :hidden].set(b1.astype(jnp.float32))
    w2p = jnp.zeros((hid_p, hid_p), weight_dtype
                    ).at[:hidden, :hidden].set(w2.astype(weight_dtype))
    b2p = jnp.zeros((1, hid_p), jnp.float32
                    ).at[:, :hidden].set(b2.astype(jnp.float32))
    w3p = jnp.zeros((hid_p, cls_p), weight_dtype
                    ).at[:hidden, :num_classes].set(w3.astype(weight_dtype))
    b3p = jnp.zeros((1, cls_p), jnp.float32
                    ).at[:, :num_classes].set(b3.astype(jnp.float32))

    meta = dict(in_features=in_features, hidden=hidden,
                num_classes=num_classes,
                in_p=in_p, hid_p=hid_p, cls_p=cls_p, tk=tk)
    return (w1p, b1p, w2p, b2p, w3p, b3p), meta


# --------------------------------------------------------------------------
# Forward pass
# --------------------------------------------------------------------------
def command_identifier_forward(x, padded_params, meta, *, batch_tile=1024,
                               act_dtype=jnp.bfloat16):
    """Fused forward of CommandIdentifier via one pallas_call.

    x: (batch, input_size) — any float dtype; cast to `act_dtype` internally.
    padded_params / meta: output of prepare_params().
    Returns (batch, num_classes) f32 logits.
    """
    w1p, b1p, w2p, b2p, w3p, b3p = padded_params
    batch, in_features = x.shape
    assert in_features == meta["in_features"]
    in_p, hid_p, cls_p, tk = meta["in_p"], meta["hid_p"], meta["cls_p"], meta["tk"]
    num_classes = meta["num_classes"]

    # ---- batch tiling -----------------------------------------------------
    tm = _round_up(min(batch_tile, _round_up(batch, SUBLANE)), SUBLANE)
    # Make sure the parallel axis has >= 2 steps when there is enough work,
    # so both TensorCores on v7x get batch tiles (no-op on single-TC v5e/v6e).
    if batch > SUBLANE and _round_up(batch, tm) // tm < 2:
        tm = _round_up(_round_up(batch, SUBLANE) // 2, SUBLANE)
    batch_p = _round_up(batch, tm)
    num_k = in_p // tk
    grid = (batch_p // tm, num_k)

    # ---- per-call activation padding only (weights already padded) --------
    xp = jnp.zeros((batch_p, in_p), act_dtype
                   ).at[:batch, :in_features].set(x.astype(act_dtype))

    # ---- VMEM budget / limit ----------------------------------------------
    wbytes = jnp.dtype(w1p.dtype).itemsize
    abytes = jnp.dtype(act_dtype).itemsize
    vmem_needed = (
        2 * tm * tk * abytes                              # x K-tiles (2 bufs)
        + 2 * tk * hid_p * wbytes                         # w1 K-tiles (2 bufs)
        + (hid_p * hid_p + hid_p * cls_p) * wbytes        # resident w2, w3 (1 buf)
        + (2 * hid_p + cls_p) * 4                         # resident f32 biases
        + 2 * tm * cls_p * 4                              # out tiles (2 bufs)
        + tm * hid_p * 4                                  # f32 accumulator
    )
    assert vmem_needed < 56 * 2**20, (
        f"resident-weight design needs ~{vmem_needed / 2**20:.1f} MiB VMEM, "
        "which exceeds the v7x 64 MiB ceiling — lower batch_tile/k_tile.")
    vmem_limit = int(min(max(2 * vmem_needed, 16 * 2**20), 64 * 2**20))

    # ---- cost hint for the XLA scheduler around the custom call ------------
    cost = pl.CostEstimate(
        flops=2 * batch_p * (in_p * hid_p + hid_p * hid_p + hid_p * cls_p),
        transcendentals=0,
        bytes_accessed=(batch_p * in_p * abytes + batch_p * cls_p * 4
                        + (in_p * hid_p + hid_p * hid_p + hid_p * cls_p) * wbytes
                        + (2 * hid_p + cls_p) * 4),
    )

    # Constant-index (resident) operands: single-buffered — they are DMA'd
    # once and never change, so double-buffering would just waste VMEM.
    def resident(shape):
        return pl.BlockSpec(shape, lambda i, k: (0, 0),
                            pipeline_mode=pl.Buffered(1))

    out_p = pl.pallas_call(
        mlp_kernel,
        out_shape=jax.ShapeDtypeStruct((batch_p, cls_p), jnp.float32),
        grid=grid,
        in_specs=[
            pl.BlockSpec((tm, tk), lambda i, k: (i, k)),      # x: batch & K tiled
            pl.BlockSpec((tk, hid_p), lambda i, k: (k, 0)),   # w1: K tiled
            resident((1, hid_p)),                             # b1
            resident((hid_p, hid_p)),                         # w2
            resident((1, hid_p)),                             # b2
            resident((hid_p, cls_p)),                         # w3
            resident((1, cls_p)),                             # b3
        ],
        out_specs=pl.BlockSpec((tm, cls_p), lambda i, k: (i, 0)),
        scratch_shapes=[pltpu.VMEM((tm, hid_p), jnp.float32)],
        compiler_params=pltpu.CompilerParams(
            dimension_semantics=("parallel", "arbitrary"),
            vmem_limit_bytes=vmem_limit,
        ),
        cost_estimate=cost,
    )(xp, w1p, b1p, w2p, b2p, w3p, b3p)

    # Slice back to the logical (batch, num_classes) logits.
    return out_p[:batch, :num_classes]


# --------------------------------------------------------------------------
# Deterministic synthetic parameters (PyTorch-Linear-like uniform init).
# --------------------------------------------------------------------------
def init_params(key, input_size, hidden_size, num_classes):
    ks = jax.random.split(key, 6)

    def linear(kw, kb, fan_in, fan_out):
        bound = 1.0 / jnp.sqrt(fan_in)
        # stored (in, out) so the kernel does x @ w  ( == x @ W.T of nn.Linear)
        w = jax.random.uniform(kw, (fan_in, fan_out), jnp.float32, -bound, bound)
        b = jax.random.uniform(kb, (1, fan_out), jnp.float32, -bound, bound)
        return w, b

    w1, b1 = linear(ks[0], ks[1], input_size, hidden_size)
    w2, b2 = linear(ks[2], ks[3], hidden_size, hidden_size)
    w3, b3 = linear(ks[4], ks[5], hidden_size, num_classes)
    return w1, b1, w2, b2, w3, b3


if __name__ == "__main__":
    # Small shapes consistent with the module: bag-of-ngrams vector -> logits.
    batch, input_size, hidden_size, num_classes = 2, 64, 32, 8

    key = jax.random.PRNGKey(0)
    k_x, k_p = jax.random.split(key)

    # Synthetic "count vector" style input (non-negative), batch of 2.
    x = jax.random.uniform(k_x, (batch, input_size), jnp.float32, 0.0, 1.0)

    # TODO(synk): invoke()'s vocabulary JSON load + pymorphy3 / CountVectorizer
    # preprocessing has no Pallas equivalent; only the NN forward is implemented.
    w1, b1, w2, b2, w3, b3 = init_params(k_p, input_size, hidden_size, num_classes)

    # One-time padding + bf16 cast of the parameters (off the hot path).
    padded_params, meta = prepare_params(w1, b1, w2, b2, w3, b3)

    out = command_identifier_forward(x, padded_params, meta)
    out = jax.block_until_ready(out)

    # Pure-JAX f32 reference; tolerance loosened for bf16 weights/activations.
    ref = jnp.maximum(x @ w1 + b1, 0.0)
    ref = jnp.maximum(ref @ w2 + b2, 0.0)
    ref = ref @ w3 + b3
    assert out.shape == (batch, num_classes)
    assert jnp.allclose(out, ref, atol=3e-2, rtol=3e-2), (
        f"max abs err {jnp.max(jnp.abs(out - ref))}")

    print("KERNEL_OK")
</pallas_src>

<mosaic_0001>
module attributes {stable_mosaic.version = 11 : i64} {
  func.func @mlp_kernel(%arg0: i32, %arg1: i32, %arg2: memref<16x128xbf16, #tpu.memory_space<vmem>>, %arg3: memref<128x128xbf16, #tpu.memory_space<vmem>>, %arg4: memref<1x128xf32, #tpu.memory_space<vmem>>, %arg5: memref<128x128xbf16, #tpu.memory_space<vmem>>, %arg6: memref<1x128xf32, #tpu.memory_space<vmem>>, %arg7: memref<128x128xbf16, #tpu.memory_space<vmem>>, %arg8: memref<1x128xf32, #tpu.memory_space<vmem>>, %arg9: memref<16x128xf32, #tpu.memory_space<vmem>>, %arg10: memref<16x128xf32, #tpu.memory_space<vmem>>) attributes {dimension_semantics = [#tpu.dimension_semantics<parallel>, #tpu.dimension_semantics<arbitrary>], iteration_bounds = array<i64: 1, 1>, scalar_prefetch = 0 : i64, scratch_operands = 1 : i64, tpu.core_type = #tpu.core_type<tc>, window_params = [{transform_indices = @transform_0, window_bounds = array<i64: 16, 128>}, {transform_indices = @transform_1, window_bounds = array<i64: 128, 128>}, {pipeline_mode = #tpu.pipeline_mode<synchronous>, transform_indices = @transform_2, window_bounds = array<i64: 1, 128>}, {pipeline_mode = #tpu.pipeline_mode<synchronous>, transform_indices = @transform_3, window_bounds = array<i64: 128, 128>}, {pipeline_mode = #tpu.pipeline_mode<synchronous>, transform_indices = @transform_4, window_bounds = array<i64: 1, 128>}, {pipeline_mode = #tpu.pipeline_mode<synchronous>, transform_indices = @transform_5, window_bounds = array<i64: 128, 128>}, {pipeline_mode = #tpu.pipeline_mode<synchronous>, transform_indices = @transform_6, window_bounds = array<i64: 1, 128>}, {transform_indices = @transform_7, window_bounds = array<i64: 16, 128>}]} {
    %c0_i32 = arith.constant 0 : i32
    %0 = arith.cmpi eq, %arg1, %c0_i32 : i32
    %1 = arith.extui %0 : i1 to i32
    %c0_i32_0 = arith.constant 0 : i32
    %2 = arith.cmpi ne, %1, %c0_i32_0 : i32
    scf.if %2 {
      %cst_10 = arith.constant 0.000000e+00 : f32
      %12 = vector.broadcast %cst_10 : f32 to vector<16x128xf32>
      %c0_11 = arith.constant 0 : index
      %c0_12 = arith.constant 0 : index
      %13 = vector.load %arg10[%c0_11, %c0_12] : memref<16x128xf32, #tpu.memory_space<vmem>>, vector<16x128xf32>
      tpu.vector_store %arg10[%c0_11, %c0_12], %12 {strides = array<i32>} : memref<16x128xf32, #tpu.memory_space<vmem>>, vector<16x128xf32>,
    } else {
    }
    %c0 = arith.constant 0 : index
    %c0_1 = arith.constant 0 : index
    %3 = vector.load %arg10[%c0, %c0_1] : memref<16x128xf32, #tpu.memory_space<vmem>>, vector<16x128xf32>
    %c0_2 = arith.constant 0 : index
    %c0_3 = arith.constant 0 : index
    %4 = vector.load %arg2[%c0_2, %c0_3] : memref<16x128xbf16, #tpu.memory_space<vmem>>, vector<16x128xbf16>
    %c0_4 = arith.constant 0 : index
    %c0_5 = arith.constant 0 : index
    %5 = vector.load %arg3[%c0_4, %c0_5] : memref<128x128xbf16, #tpu.memory_space<vmem>>, vector<128x128xbf16>
    %cst = arith.constant dense<0.000000e+00> : vector<16x128xf32>
    %6 = tpu.matmul %4, %5, %cst {dimension_numbers = #tpu.dot_dimension_numbers<[1], [0], [0], [1], [0, 0, 1, 1], [], []>} : vector<16x128xbf16>, vector<128x128xbf16>, vector<16x128xf32> -> vector<16x128xf32>
    %7 = arith.addf %3, %6 : vector<16x128xf32>
    %c0_6 = arith.constant 0 : index
    %c0_7 = arith.constant 0 : index
    %8 = vector.load %arg10[%c0_6, %c0_7] : memref<16x128xf32, #tpu.memory_space<vmem>>, vector<16x128xf32>
    tpu.vector_store %arg10[%c0_6, %c0_7], %7 {strides = array<i32>} : memref<16x128xf32, #tpu.memory_space<vmem>>, vector<16x128xf32>,
    %c0_i32_8 = arith.constant 0 : i32
    %9 = arith.cmpi eq, %arg1, %c0_i32_8 : i32
    %10 = arith.extui %9 : i1 to i32
    %c0_i32_9 = arith.constant 0 : i32
    %11 = arith.cmpi ne, %10, %c0_i32_9 : i32
    scf.if %11 {
      %c0_10 = arith.constant 0 : index
      %c0_11 = arith.constant 0 : index
      %12 = vector.load %arg10[%c0_10, %c0_11] : memref<16x128xf32, #tpu.memory_space<vmem>>, vector<16x128xf32>
      %c0_12 = arith.constant 0 : index
      %c0_13 = arith.constant 0 : index
      %13 = vector.load %arg4[%c0_12, %c0_13] : memref<1x128xf32, #tpu.memory_space<vmem>>, vector<1x128xf32>
      %14 = vector.broadcast %13 : vector<1x128xf32> to vector<16x128xf32>
      %15 = arith.addf %12, %14 : vector<16x128xf32>
      %cst_14 = arith.constant 0.000000e+00 : f32
      %16 = vector.broadcast %cst_14 : f32 to vector<16x128xf32>
      %17 = arith.maximumf %15, %16 : vector<16x128xf32>
      %18 = arith.truncf %17 : vector<16x128xf32> to vector<16x128xbf16>
      %c0_15 = arith.constant 0 : index
      %c0_16 = arith.constant 0 : index
      %19 = vector.load %arg5[%c0_15, %c0_16] : memref<128x128xbf16, #tpu.memory_space<vmem>>, vector<128x128xbf16>
      %cst_17 = arith.constant dense<0.000000e+00> : vector<16x128xf32>
      %20 = tpu.matmul %18, %19, %cst_17 {dimension_numbers = #tpu.dot_dimension_numbers<[1], [0], [0], [1], [0, 0, 1, 1], [], []>} : vector<16x128xbf16>, vector<128x128xbf16>, vector<16x128xf32> -> vector<16x128xf32>
      %c0_18 = arith.constant 0 : index
      %c0_19 = arith.constant 0 : index
      %21 = vector.load %arg6[%c0_18, %c0_19] : memref<1x128xf32, #tpu.memory_space<vmem>>, vector<1x128xf32>
      %22 = vector.broadcast %21 : vector<1x128xf32> to vector<16x128xf32>
      %23 = arith.addf %20, %22 : vector<16x128xf32>
      %cst_20 = arith.constant 0.000000e+00 : f32
      %24 = vector.broadcast %cst_20 : f32 to vector<16x128xf32>
      %25 = arith.maximumf %23, %24 : vector<16x128xf32>
      %26 = arith.truncf %25 : vector<16x128xf32> to vector<16x128xbf16>
      %c0_21 = arith.constant 0 : index
      %c0_22 = arith.constant 0 : index
      %27 = vector.load %arg7[%c0_21, %c0_22] : memref<128x128xbf16, #tpu.memory_space<vmem>>, vector<128x128xbf16>
      %cst_23 = arith.constant dense<0.000000e+00> : vector<16x128xf32>
      %28 = tpu.matmul %26, %27, %cst_23 {dimension_numbers = #tpu.dot_dimension_numbers<[1], [0], [0], [1], [0, 0, 1, 1], [], []>} : vector<16x128xbf16>, vector<128x128xbf16>, vector<16x128xf32> -> vector<16x128xf32>
      %c0_24 = arith.constant 0 : index
      %c0_25 = arith.constant 0 : index
      %29 = vector.load %arg8[%c0_24, %c0_25] : memref<1x128xf32, #tpu.memory_space<vmem>>, vector<1x128xf32>
      %30 = vector.broadcast %29 : vector<1x128xf32> to vector<16x128xf32>
      %31 = arith.addf %28, %30 : vector<16x128xf32>
      %c0_26 = arith.constant 0 : index
      %c0_27 = arith.constant 0 : index
      %32 = vector.load %arg9[%c0_26, %c0_27] : memref<16x128xf32, #tpu.memory_space<vmem>>, vector<16x128xf32>
      tpu.vector_store %arg9[%c0_26, %c0_27], %31 {strides = array<i32>} : memref<16x128xf32, #tpu.memory_space<vmem>>, vector<16x128xf32>,
    } else {
    }
    return
  }
  func.func @transform_0(%arg0: i32, %arg1: i32) -> (i32, i32) {
    %c0_i32 = arith.constant 0 : i32
    return %arg0, %arg1 : i32, i32
  }
  func.func @transform_1(%arg0: i32, %arg1: i32) -> (i32, i32) {
    %c0_i32 = arith.constant 0 : i32
    %c0_i32_0 = arith.constant 0 : i32
    return %arg1, %c0_i32 : i32, i32
  }
  func.func @transform_2(%arg0: i32, %arg1: i32) -> (i32, i32) {
    %c0_i32 = arith.constant 0 : i32
    %c0_i32_0 = arith.constant 0 : i32
    %c0_i32_1 = arith.constant 0 : i32
    return %c0_i32, %c0_i32_0 : i32, i32
  }
  func.func @transform_3(%arg0: i32, %arg1: i32) -> (i32, i32) {
    %c0_i32 = arith.constant 0 : i32
    %c0_i32_0 = arith.constant 0 : i32
    %c0_i32_1 = arith.constant 0 : i32
    return %c0_i32, %c0_i32_0 : i32, i32
  }
  func.func @transform_4(%arg0: i32, %arg1: i32) -> (i32, i32) {
    %c0_i32 = arith.constant 0 : i32
    %c0_i32_0 = arith.constant 0 : i32
    %c0_i32_1 = arith.constant 0 : i32
    return %c0_i32, %c0_i32_0 : i32, i32
  }
  func.func @transform_5(%arg0: i32, %arg1: i32) -> (i32, i32) {
    %c0_i32 = arith.constant 0 : i32
    %c0_i32_0 = arith.constant 0 : i32
    %c0_i32_1 = arith.constant 0 : i32
    return %c0_i32, %c0_i32_0 : i32, i32
  }
  func.func @transform_6(%arg0: i32, %arg1: i32) -> (i32, i32) {
    %c0_i32 = arith.constant 0 : i32
    %c0_i32_0 = arith.constant 0 : i32
    %c0_i32_1 = arith.constant 0 : i32
    return %c0_i32, %c0_i32_0 : i32, i32
  }
  func.func @transform_7(%arg0: i32, %arg1: i32) -> (i32, i32) {
    %c0_i32 = arith.constant 0 : i32
    %c0_i32_0 = arith.constant 0 : i32
    return %arg0, %c0_i32 : i32, i32
  }
}

</mosaic_0001>

<llo_original>
// kernel: tpu_custom_call.1
$region0: #{tpu_custom_call.1}
  #allocation0 [shape = 'u32[]', space=smem, size = 0x4, offset = 0x4, fixed_abs, tag = 'smem constant byte address 0x4 - core index']
  #allocation1 [shape = 'u32[144,128]{1,0:T(1,128)}', space=vmem, size = 0x12000, scoped, tag = 'internal scratch']
  #allocation2 [shape = 'f32[16,128]{1,0:T(8,128)}', space=vmem, size = 0x2000, scoped, tag = 'scratch operand']
  %s0 = inlined_call_operand.hbm [shape: bf16[16,128], index: 0, kind: input, shape index: {}]
  %s1 = inlined_call_operand.hbm [shape: bf16[128,128], index: 1, kind: input, shape index: {}]
  %s2 = inlined_call_operand.vmem [shape: f32[1,128], index: 2, kind: input, shape index: {}]
  %s3 = inlined_call_operand.hbm [shape: bf16[128,128], index: 3, kind: input, shape index: {}]
  %s4 = inlined_call_operand.vmem [shape: f32[1,128], index: 4, kind: input, shape index: {}]
  %s5 = inlined_call_operand.hbm [shape: bf16[128,128], index: 5, kind: input, shape index: {}]
  %s6 = inlined_call_operand.vmem [shape: f32[1,128], index: 6, kind: input, shape index: {}]
  %s7 = inlined_call_operand.hbm [shape: f32[16,128], index: 7, kind: output, shape index: {}]
  %s8 = sld [smem:[#allocation0]]
  $region62: #{tpu_custom_call.1} parent=0
    _
  %s10 = ssub.s32 1, %s8
  %s11 = scalar_select 0, %s10, %s8
  $region1: #{tpu_custom_call.1} parent=0
    #allocation3 [shape = 'u8[4096]{0}', space=vmem, size = 0x1000, scoped, tag = 'input window, operand 0, single buffered']
    #allocation4 [shape = 's32[1]{0}', space=sflag, size = 0x4, scoped, tag = 'scoped memory for tpu_custom_call.1']
    #allocation5 [shape = 's32[1]{0}', space=sflag, size = 0x4, scoped, tag = 'scoped memory for tpu_custom_call.1']
    #allocation6 [shape = 'u8[32768]{0}', space=vmem, size = 0x8000, scoped, tag = 'input window, operand 1, single buffered']
    #allocation7 [shape = 's32[1]{0}', space=sflag, size = 0x4, scoped, tag = 'scoped memory for tpu_custom_call.1']
    #allocation8 [shape = 'u8[32768]{0}', space=vmem, size = 0x8000, scoped, tag = 'input window, operand 3, single buffered']
    #allocation9 [shape = 'u8[32768]{0}', space=vmem, size = 0x8000, scoped, tag = 'input window, operand 5, single buffered']
    #allocation10 [shape = 's32[1]{0}', space=sflag, size = 0x4, scoped, tag = 'scoped memory for tpu_custom_call.1']
    #allocation11 [shape = 'u8[8192]{0}', space=vmem, size = 0x2000, scoped, tag = 'output window, operand 0, single buffered']
    %12 = vsyncpa [#allocation4], 0
    %13 = vsyncpa [#allocation7], 0
    %14 = vsyncpa [#allocation10], 0
    %15 = vsyncpa [#allocation5], 0
    // Predicated region
    $region2: #{tpu_custom_call.1} parent=1 // pred_check
      _
    $region3: #{tpu_custom_call.1} parent=1 // pred_check_branch
      %17 = sbr.rel (0) target = $region5
    $region4: #{tpu_custom_call.1} parent=1 // pred_region
      %s19 = ssub.s32 128, 128
      %20 = vsyncadd [#allocation4], %s19
      %s21 = sshll.u32 [#allocation3], 4
      %s22 = int_to_ptr.vmem [resolvable:$true] %s21
      %27 = dma.hbm_to_vmem [thread:$0]  %s0, 128, %s22, [#allocation4], 64, 64, 4
    $region5: #{tpu_custom_call.1} parent=1 // pred_fallthru
      _
    // Predicated region
    $region6: #{tpu_custom_call.1} parent=1 // pred_check
      _
    $region7: #{tpu_custom_call.1} parent=1 // pred_check_branch
      %29 = sbr.rel (0) target = $region9
    $region8: #{tpu_custom_call.1} parent=1 // pred_region
      %s31 = ssub.s32 1024, 1024
      %32 = vsyncadd [#allocation7], %s31
      %s33 = sshll.u32 [#allocation6], 4
      %s34 = int_to_ptr.vmem [resolvable:$true] %s33
      %39 = dma.hbm_to_vmem [thread:$0]  %s1, 1024, %s34, [#allocation7], 64, 64, 4
    $region9: #{tpu_custom_call.1} parent=1 // pred_fallthru
      _
    // Predicated region
    $region10: #{tpu_custom_call.1} parent=1 // pred_check
      _
    $region11: #{tpu_custom_call.1} parent=1 // pred_check_branch
      %41 = sbr.rel (0) target = $region13
    $region12: #{tpu_custom_call.1} parent=1 // pred_region
      _
    $region13: #{tpu_custom_call.1} parent=1 // pred_fallthru
      _
    // Predicated region
    $region14: #{tpu_custom_call.1} parent=1 // pred_check
      _
    $region15: #{tpu_custom_call.1} parent=1 // pred_check_branch
      %43 = sbr.rel (0) target = $region17
    $region16: #{tpu_custom_call.1} parent=1 // pred_region
      %s45 = ssub.s32 1024, 1024
      %46 = vsyncadd [#allocation7], %s45
      %s47 = sshll.u32 [#allocation8], 4
      %s48 = int_to_ptr.vmem [resolvable:$true] %s47
      %53 = dma.hbm_to_vmem [thread:$0]  %s3, 1024, %s48, [#allocation7], 64, 64, 4
    $region17: #{tpu_custom_call.1} parent=1 // pred_fallthru
      _
    // Predicated region
    $region18: #{tpu_custom_call.1} parent=1 // pred_check
      _
    $region19: #{tpu_custom_call.1} parent=1 // pred_check_branch
      %55 = sbr.rel (0) target = $region21
    $region20: #{tpu_custom_call.1} parent=1 // pred_region
      _
    $region21: #{tpu_custom_call.1} parent=1 // pred_fallthru
      _
    // Predicated region
    $region22: #{tpu_custom_call.1} parent=1 // pred_check
      _
    $region23: #{tpu_custom_call.1} parent=1 // pred_check_branch
      %57 = sbr.rel (0) target = $region25
    $region24: #{tpu_custom_call.1} parent=1 // pred_region
      %s59 = ssub.s32 1024, 1024
      %60 = vsyncadd [#allocation10], %s59
      %s61 = sshll.u32 [#allocation9], 4
      %s62 = int_to_ptr.vmem [resolvable:$true] %s61
      %67 = dma.hbm_to_vmem [thread:$0]  %s5, 1024, %s62, [#allocation10], 64, 64, 4
    $region25: #{tpu_custom_call.1} parent=1 // pred_fallthru
      _
    // Predicated region
    $region26: #{tpu_custom_call.1} parent=1 // pred_check
      _
    $region27: #{tpu_custom_call.1} parent=1 // pred_check_branch
      %69 = sbr.rel (0) target = $region29
    $region28: #{tpu_custom_call.1} parent=1 // pred_region
      _
    $region29: #{tpu_custom_call.1} parent=1 // pred_fallthru
      _
    // Predicated region
    $region30: #{tpu_custom_call.1} parent=1 // pred_check
      _
    $region31: #{tpu_custom_call.1} parent=1 // pred_check_branch
      %71 = sbr.rel (0) target = $region33
    $region32: #{tpu_custom_call.1} parent=1 // pred_region
      %72 = dma.done [#allocation4], 128
    $region33: #{tpu_custom_call.1} parent=1 // pred_fallthru
      _
    // Predicated region
    $region34: #{tpu_custom_call.1} parent=1 // pred_check
      _
    $region35: #{tpu_custom_call.1} parent=1 // pred_check_branch
      %74 = sbr.rel (0) target = $region37
    $region36: #{tpu_custom_call.1} parent=1 // pred_region
      %75 = dma.done [#allocation7], 1024
    $region37: #{tpu_custom_call.1} parent=1 // pred_fallthru
      _
    // Predicated region
    $region38: #{tpu_custom_call.1} parent=1 // pred_check
      _
    $region39: #{tpu_custom_call.1} parent=1 // pred_check_branch
      %77 = sbr.rel (0) target = $region41
    $region40: #{tpu_custom_call.1} parent=1 // pred_region
      %78 = dma.done [#allocation7], 1024
    $region41: #{tpu_custom_call.1} parent=1 // pred_fallthru
      _
    // Predicated region
    $region42: #{tpu_custom_call.1} parent=1 // pred_check
      _
    $region43: #{tpu_custom_call.1} parent=1 // pred_check_branch
      %80 = sbr.rel (0) target = $region45
    $region44: #{tpu_custom_call.1} parent=1 // pred_region
      %81 = dma.done [#allocation10], 1024
    $region45: #{tpu_custom_call.1} parent=1 // pred_fallthru
      _
    %p83 = scmp.eq.s32.totalorder 0, 0
    // Predicated region
    $region46: #{tpu_custom_call.1} parent=1 // pred_check
      %p84 = pneg %p83
    $region47: #{tpu_custom_call.1} parent=1 // pred_check_branch
      %86 = sbr.rel (%p84) target = $region49
    $region48: #{tpu_custom_call.1} parent=1 // pred_region
      %87 = vst [vmem:[#allocation2] sm:$0xff] 0.0
      %88 = vst [vmem:[#allocation2 + $0x8] sm:$0xff] 0.0
    $region49: #{tpu_custom_call.1} parent=1 // pred_fallthru
      _
    %v89 = vld [vmem:[#allocation2] sm:$0xff]
    %v90 = vld [vmem:[#allocation2 + $0x8] sm:$0xff]
    %v91 = vld [vmem:[#allocation3] sm:$0xf]
    %v92 = vld [vmem:[#allocation3 + $0x4] sm:$0xf]
    %v93 = vld [vmem:[#allocation6] sm:$0xf]
    %v94 = vld [vmem:[#allocation6 + $0x4] sm:$0xf]
    %v95 = vld [vmem:[#allocation6 + $0x8] sm:$0xf]
    %v96 = vld [vmem:[#allocation6 + $0xc] sm:$0xf]
    %v97 = vld [vmem:[#allocation6 + $0x10] sm:$0xf]
    %v98 = vld [vmem:[#allocation6 + $0x14] sm:$0xf]
    %v99 = vld [vmem:[#allocation6 + $0x18] sm:$0xf]
    %v100 = vld [vmem:[#allocation6 + $0x1c] sm:$0xf]
    %v101 = vld [vmem:[#allocation6 + $0x20] sm:$0xf]
    %v102 = vld [vmem:[#allocation6 + $0x24] sm:$0xf]
    %v103 = vld [vmem:[#allocation6 + $0x28] sm:$0xf]
    %v104 = vld [vmem:[#allocation6 + $0x2c] sm:$0xf]
    %v105 = vld [vmem:[#allocation6 + $0x30] sm:$0xf]
    %v106 = vld [vmem:[#allocation6 + $0x34] sm:$0xf]
    %v107 = vld [vmem:[#allocation6 + $0x38] sm:$0xf]
    %v108 = vld [vmem:[#allocation6 + $0x3c] sm:$0xf]
    %v111 = vunpack.c.l.b16 %v91
    %v112 = vunpack.c.l.b16 %v92
    %v113 = vpack.c.b16 %v112, %v111
    %v131 = vunpack.c.l.b16 %v93
    %v132 = vunpack.c.l.b16 %v94
    %v133 = vunpack.c.l.b16 %v95
    %v134 = vunpack.c.l.b16 %v96
    %v135 = vunpack.c.l.b16 %v97
    %v136 = vunpack.c.l.b16 %v98
    %v137 = vunpack.c.l.b16 %v99
    %v138 = vunpack.c.l.b16 %v100
    %v139 = vunpack.c.l.b16 %v101
    %v140 = vunpack.c.l.b16 %v102
    %v141 = vunpack.c.l.b16 %v103
    %v142 = vunpack.c.l.b16 %v104
    %v143 = vunpack.c.l.b16 %v105
    %v144 = vunpack.c.l.b16 %v106
    %v145 = vunpack.c.l.b16 %v107
    %v146 = vunpack.c.l.b16 %v108
    %v147 = vpack.c.b16 %v132, %v131
    %v148 = vpack.c.b16 %v134, %v133
    %v149 = vpack.c.b16 %v136, %v135
    %v150 = vpack.c.b16 %v138, %v137
    %v151 = vpack.c.b16 %v140, %v139
    %v152 = vpack.c.b16 %v142, %v141
    %v153 = vpack.c.b16 %v144, %v143
    %v154 = vpack.c.b16 %v146, %v145
    %163 = vmatprep.subr.bf16.mxu0 0
    %164 = vmatpush1.bf16.msra.mxu0 %v147
    %165 = vmatprep.subr.bf16.mxu0 0
    %166 = vmatpush1.bf16.msra.mxu0 %v148
    %167 = vmatprep.subr.bf16.mxu0 0
    %168 = vmatpush1.bf16.msra.mxu0 %v149
    %169 = vmatprep.subr.bf16.mxu0 0
    %170 = vmatpush1.bf16.msra.mxu0 %v150
    %171 = vmatprep.subr.bf16.mxu0 0
    %172 = vmatpush1.bf16.msra.mxu0 %v151
    %173 = vmatprep.subr.bf16.mxu0 0
    %174 = vmatpush1.bf16.msra.mxu0 %v152
    %175 = vmatprep.subr.bf16.mxu0 0
    %176 = vmatpush1.bf16.msra.mxu0 %v153
    %177 = vmatprep.subr.bf16.mxu0 0
    %178 = vmatpush1.bf16.msra.mxu0 %v154
    %179 = vmatprep.subr.bf16.mxu0 0
    %180 = vmatpush1.bf16.msra.mxu0 0
    %181 = vmatprep.subr.bf16.mxu0 0
    %182 = vmatpush1.bf16.msra.mxu0 0
    %183 = vmatprep.subr.bf16.mxu0 0
    %184 = vmatpush1.bf16.msra.mxu0 0
    %185 = vmatprep.subr.bf16.mxu0 0
    %186 = vmatpush1.bf16.msra.mxu0 0
    %187 = vmatprep.subr.bf16.mxu0 0
    %188 = vmatpush1.bf16.msra.mxu0 0
    %189 = vmatprep.subr.bf16.mxu0 0
    %190 = vmatpush1.bf16.msra.mxu0 0
    %191 = vmatprep.subr.bf16.mxu0 0
    %192 = vmatpush1.bf16.msra.mxu0 0
    %193 = vmatprep.subr.bf16.mxu0 0
    %194 = vmatpush1.bf16.msra.mxu0 0
    %195 = vmatprep.mubr.bf16.mxu0 0
    %196 = vmatmul.mubr.bf16.gmra.mrb[0].mxu0 %v113
    %v197 = vpop.f32.mrb[0].mxu0
    %v198 = vadd.f32 0.0, %v197
    %v199 = vpop.f32.mrb[0].mxu0
    %v200 = vpop.f32.mrb[0].mxu0
    %v201 = vadd.f32 0.0, %v200
    %v202 = vpop.f32.mrb[0].mxu0
    %203 = vdwg.mxu0
    %v204 = vadd.f32 %v89, %v198
    %v205 = vadd.f32 %v90, %v201
    %206 = vst [vmem:[#allocation2] sm:$0xff] %v204
    %207 = vst [vmem:[#allocation2 + $0x8] sm:$0xff] %v205
    // Predicated region
    $region50: #{tpu_custom_call.1} parent=1 // pred_check
      %p208 = pneg %p83
    $region51: #{tpu_custom_call.1} parent=1 // pred_check_branch
      %210 = sbr.rel (%p208) target = $region53
    $region52: #{tpu_custom_call.1} parent=1 // pred_region
      %v211 = vld [vmem:[#allocation2] sm:$0xff]
      %v212 = vld [vmem:[#allocation2 + $0x8] sm:$0xff]
      %v213 = vld [vmem:[%s2] sm:$0x1]
      %v215 = vlaneseq
      %v216 = vshrl.u32 %v215, 7
      %v217 = vsub.s32 0, %v216
      %v218 = vrot.slane %v213, %v217
      %v220 = vadd.f32 %v211, %v218
      %v221 = vadd.f32 %v212, %v218
      %v222 = vmax.f32 %v220, 0.0
      %v223 = vmax.f32 %v221, 0.0
      %v224 = vpack.c.bf16 %v223, %v222
      %v225 = vld [vmem:[#allocation8] sm:$0xf]
      %v226 = vld [vmem:[#allocation8 + $0x4] sm:$0xf]
      %v227 = vld [vmem:[#allocation8 + $0x8] sm:$0xf]
      %v228 = vld [vmem:[#allocation8 + $0xc] sm:$0xf]
      %v229 = vld [vmem:[#allocation8 + $0x10] sm:$0xf]
      %v230 = vld [vmem:[#allocation8 + $0x14] sm:$0xf]
      %v231 = vld [vmem:[#allocation8 + $0x18] sm:$0xf]
      %v232 = vld [vmem:[#allocation8 + $0x1c] sm:$0xf]
      %v233 = vld [vmem:[#allocation8 + $0x20] sm:$0xf]
      %v234 = vld [vmem:[#allocation8 + $0x24] sm:$0xf]
      %v235 = vld [vmem:[#allocation8 + $0x28] sm:$0xf]
      %v236 = vld [vmem:[#allocation8 + $0x2c] sm:$0xf]
      %v237 = vld [vmem:[#allocation8 + $0x30] sm:$0xf]
      %v238 = vld [vmem:[#allocation8 + $0x34] sm:$0xf]
      %v239 = vld [vmem:[#allocation8 + $0x38] sm:$0xf]
      %v240 = vld [vmem:[#allocation8 + $0x3c] sm:$0xf]
      %v241 = vld [vmem:[%s4] sm:$0x1]
      %v243 = vlaneseq
      %v244 = vshrl.u32 %v243, 7
      %v245 = vsub.s32 0, %v244
      %v246 = vrot.slane %v241, %v245
      %v264 = vunpack.c.l.b16 %v225
      %v265 = vunpack.c.l.b16 %v226
      %v266 = vunpack.c.l.b16 %v227
      %v267 = vunpack.c.l.b16 %v228
      %v268 = vunpack.c.l.b16 %v229
      %v269 = vunpack.c.l.b16 %v230
      %v270 = vunpack.c.l.b16 %v231
      %v271 = vunpack.c.l.b16 %v232
      %v272 = vunpack.c.l.b16 %v233
      %v273 = vunpack.c.l.b16 %v234
      %v274 = vunpack.c.l.b16 %v235
      %v275 = vunpack.c.l.b16 %v236
      %v276 = vunpack.c.l.b16 %v237
      %v277 = vunpack.c.l.b16 %v238
      %v278 = vunpack.c.l.b16 %v239
      %v279 = vunpack.c.l.b16 %v240
      %v280 = vpack.c.b16 %v265, %v264
      %v281 = vpack.c.b16 %v267, %v266
      %v282 = vpack.c.b16 %v269, %v268
      %v283 = vpack.c.b16 %v271, %v270
      %v284 = vpack.c.b16 %v273, %v272
      %v285 = vpack.c.b16 %v275, %v274
      %v286 = vpack.c.b16 %v277, %v276
      %v287 = vpack.c.b16 %v279, %v278
      %296 = vmatprep.subr.bf16.mxu0 0
      %297 = vmatpush1.bf16.msra.mxu0 %v280
      %298 = vmatprep.subr.bf16.mxu0 0
      %299 = vmatpush1.bf16.msra.mxu0 %v281
      %300 = vmatprep.subr.bf16.mxu0 0
      %301 = vmatpush1.bf16.msra.mxu0 %v282
      %302 = vmatprep.subr.bf16.mxu0 0
      %303 = vmatpush1.bf16.msra.mxu0 %v283
      %304 = vmatprep.subr.bf16.mxu0 0
      %305 = vmatpush1.bf16.msra.mxu0 %v284
      %306 = vmatprep.subr.bf16.mxu0 0
      %307 = vmatpush1.bf16.msra.mxu0 %v285
      %308 = vmatprep.subr.bf16.mxu0 0
      %309 = vmatpush1.bf16.msra.mxu0 %v286
      %310 = vmatprep.subr.bf16.mxu0 0
      %311 = vmatpush1.bf16.msra.mxu0 %v287
      %312 = vmatprep.subr.bf16.mxu0 0
      %313 = vmatpush1.bf16.msra.mxu0 0
      %314 = vmatprep.subr.bf16.mxu0 0
      %315 = vmatpush1.bf16.msra.mxu0 0
      %316 = vmatprep.subr.bf16.mxu0 0
      %317 = vmatpush1.bf16.msra.mxu0 0
      %318 = vmatprep.subr.bf16.mxu0 0
      %319 = vmatpush1.bf16.msra.mxu0 0
      %320 = vmatprep.subr.bf16.mxu0 0
      %321 = vmatpush1.bf16.msra.mxu0 0
      %322 = vmatprep.subr.bf16.mxu0 0
      %323 = vmatpush1.bf16.msra.mxu0 0
      %324 = vmatprep.subr.bf16.mxu0 0
      %325 = vmatpush1.bf16.msra.mxu0 0
      %326 = vmatprep.subr.bf16.mxu0 0
      %327 = vmatpush1.bf16.msra.mxu0 0
      %328 = vmatprep.mubr.bf16.mxu0 0
      %329 = vmatmul.mubr.bf16.gmra.mrb[0].mxu0 %v224
      %v330 = vpop.f32.mrb[0].mxu0
      %v331 = vadd.f32 %v246, %v330
      %v332 = vpop.f32.mrb[0].mxu0
      %v333 = vpop.f32.mrb[0].mxu0
      %v334 = vadd.f32 %v246, %v333
      %v335 = vpop.f32.mrb[0].mxu0
      %336 = vdwg.mxu0
      %v337 = vmax.f32 %v331, 0.0
      %v338 = vmax.f32 %v334, 0.0
      %v339 = vpack.c.bf16 %v338, %v337
      %v340 = vld [vmem:[#allocation9] sm:$0xf]
      %v341 = vld [vmem:[#allocation9 + $0x4] sm:$0xf]
      %v342 = vld [vmem:[#allocation9 + $0x8] sm:$0xf]
      %v343 = vld [vmem:[#allocation9 + $0xc] sm:$0xf]
      %v344 = vld [vmem:[#allocation9 + $0x10] sm:$0xf]
      %v345 = vld [vmem:[#allocation9 + $0x14] sm:$0xf]
      %v346 = vld [vmem:[#allocation9 + $0x18] sm:$0xf]
      %v347 = vld [vmem:[#allocation9 + $0x1c] sm:$0xf]
      %v348 = vld [vmem:[#allocation9 + $0x20] sm:$0xf]
      %v349 = vld [vmem:[#allocation9 + $0x24] sm:$0xf]
      %v350 = vld [vmem:[#allocation9 + $0x28] sm:$0xf]
      %v351 = vld [vmem:[#allocation9 + $0x2c] sm:$0xf]
      %v352 = vld [vmem:[#allocation9 + $0x30] sm:$0xf]
      %v353 = vld [vmem:[#allocation9 + $0x34] sm:$0xf]
      %v354 = vld [vmem:[#allocation9 + $0x38] sm:$0xf]
      %v355 = vld [vmem:[#allocation9 + $0x3c] sm:$0xf]
      %v356 = vld [vmem:[%s6] sm:$0x1]
      %v358 = vlaneseq
      %v359 = vshrl.u32 %v358, 7
      %v360 = vsub.s32 0, %v359
      %v361 = vrot.slane %v356, %v360
      %v379 = vunpack.c.l.b16 %v340
      %v380 = vunpack.c.l.b16 %v341
      %v381 = vunpack.c.l.b16 %v342
      %v382 = vunpack.c.l.b16 %v343
      %v383 = vunpack.c.l.b16 %v344
      %v384 = vunpack.c.l.b16 %v345
      %v385 = vunpack.c.l.b16 %v346
      %v386 = vunpack.c.l.b16 %v347
      %v387 = vunpack.c.l.b16 %v348
      %v388 = vunpack.c.l.b16 %v349
      %v389 = vunpack.c.l.b16 %v350
      %v390 = vunpack.c.l.b16 %v351
      %v391 = vunpack.c.l.b16 %v352
      %v392 = vunpack.c.l.b16 %v353
      %v393 = vunpack.c.l.b16 %v354
      %v394 = vunpack.c.l.b16 %v355
      %v395 = vpack.c.b16 %v380, %v379
      %v396 = vpack.c.b16 %v382, %v381
      %v397 = vpack.c.b16 %v384, %v383
      %v398 = vpack.c.b16 %v386, %v385
      %v399 = vpack.c.b16 %v388, %v387
      %v400 = vpack.c.b16 %v390, %v389
      %v401 = vpack.c.b16 %v392, %v391
      %v402 = vpack.c.b16 %v394, %v393
      %411 = vmatprep.subr.bf16.mxu0 0
      %412 = vmatpush1.bf16.msra.mxu0 %v395
      %413 = vmatprep.subr.bf16.mxu0 0
      %414 = vmatpush1.bf16.msra.mxu0 %v396
      %415 = vmatprep.subr.bf16.mxu0 0
      %416 = vmatpush1.bf16.msra.mxu0 %v397
      %417 = vmatprep.subr.bf16.mxu0 0
      %418 = vmatpush1.bf16.msra.mxu0 %v398
      %419 = vmatprep.subr.bf16.mxu0 0
      %420 = vmatpush1.bf16.msra.mxu0 %v399
      %421 = vmatprep.subr.bf16.mxu0 0
      %422 = vmatpush1.bf16.msra.mxu0 %v400
      %423 = vmatprep.subr.bf16.mxu0 0
      %424 = vmatpush1.bf16.msra.mxu0 %v401
      %425 = vmatprep.subr.bf16.mxu0 0
      %426 = vmatpush1.bf16.msra.mxu0 %v402
      %427 = vmatprep.subr.bf16.mxu0 0
      %428 = vmatpush1.bf16.msra.mxu0 0
      %429 = vmatprep.subr.bf16.mxu0 0
      %430 = vmatpush1.bf16.msra.mxu0 0
      %431 = vmatprep.subr.bf16.mxu0 0
      %432 = vmatpush1.bf16.msra.mxu0 0
      %433 = vmatprep.subr.bf16.mxu0 0
      %434 = vmatpush1.bf16.msra.mxu0 0
      %435 = vmatprep.subr.bf16.mxu0 0
      %436 = vmatpush1.bf16.msra.mxu0 0
      %437 = vmatprep.subr.bf16.mxu0 0
      %438 = vmatpush1.bf16.msra.mxu0 0
      %439 = vmatprep.subr.bf16.mxu0 0
      %440 = vmatpush1.bf16.msra.mxu0 0
      %441 = vmatprep.subr.bf16.mxu0 0
      %442 = vmatpush1.bf16.msra.mxu0 0
      %443 = vmatprep.mubr.bf16.mxu0 0
      %444 = vmatmul.mubr.bf16.gmra.mrb[0].mxu0 %v339
      %v445 = vpop.f32.mrb[0].mxu0
      %v446 = vadd.f32 %v361, %v445
      %v447 = vpop.f32.mrb[0].mxu0
      %v448 = vpop.f32.mrb[0].mxu0
      %v449 = vadd.f32 %v361, %v448
      %v450 = vpop.f32.mrb[0].mxu0
      %451 = vdwg.mxu0
      %452 = vst [vmem:[#allocation11] sm:$0xff] %v446
      %453 = vst [vmem:[#allocation11 + $0x8] sm:$0xff] %v449
    $region53: #{tpu_custom_call.1} parent=1 // pred_fallthru
      _
    // Predicated region
    $region54: #{tpu_custom_call.1} parent=1 // pred_check
      _
    $region55: #{tpu_custom_call.1} parent=1 // pred_check_branch
      %455 = sbr.rel (0) target = $region57
    $region56: #{tpu_custom_call.1} parent=1 // pred_region
      %s457 = ssub.s32 256, 256
      %458 = vsyncadd [#allocation5], %s457
      %s459 = sshll.u32 [#allocation11], 4
      %s460 = int_to_ptr.vmem [resolvable:$true] %s459
      %465 = dma.vmem_to_hbm [thread:$0]  %s460, 256, %s7, [#allocation5], 128, 128, 8
    $region57: #{tpu_custom_call.1} parent=1 // pred_fallthru
      _
    // Predicated region
    $region58: #{tpu_custom_call.1} parent=1 // pred_check
      _
    $region59: #{tpu_custom_call.1} parent=1 // pred_check_branch
      %467 = sbr.rel (0) target = $region61
    $region60: #{tpu_custom_call.1} parent=1 // pred_region
      %468 = dma.done [#allocation5], 256
    $region61: #{tpu_custom_call.1} parent=1 // pred_fallthru
      _
    %469 = vsyncpa [#allocation4], 1
    %470 = vsyncpa [#allocation7], 1
    %471 = vsyncpa [#allocation10], 1
    %472 = vsyncpa [#allocation5], 1

</llo_original>
